<compile_context>
chip_gen: v7x
topology: tpu7x:2x2x1
jax: 0.10.0
libtpu: 0.0.40
codegen_flags: <defaults>
</compile_context>

<pallas_src>
import math
import functools

import jax
import jax.numpy as jnp
from jax.experimental import pallas as pl
from jax.experimental.pallas import tpu as pltpu


def _flash_sdpa_kernel(q_ref, k_ref, v_ref, mask_ref, o_ref,
                       m_sc, l_sc, acc_sc, *, scale):
    """One (head-group, q-tile, kv-tile) step of masked flash attention.

    q_ref:    (G, tq, d_k)
    k_ref:    (G, tk, d_k)
    v_ref:    (G, tk, d_v)
    mask_ref: (G, tq, tk) int8 (nonzero => masked with -1e9)
    o_ref:    (G, tq, d_v)  -- same block across the kv axis (accumulator out)
    m_sc, l_sc: (G, tq, 1) f32 scratch; acc_sc: (G, tq, d_v) f32 scratch
    """
    kv = pl.program_id(2)

    @pl.when(kv == 0)
    def _():
        m_sc[...] = jnp.full_like(m_sc, -jnp.inf)
        l_sc[...] = jnp.zeros_like(l_sc)
        acc_sc[...] = jnp.zeros_like(acc_sc)

    # scores = Q @ K^T / sqrt(d_k): contract d_k directly (no k.T transpose).
    s = jnp.einsum("gqd,gkd->gqk", q_ref[...], k_ref[...],
                   preferred_element_type=jnp.float32)
    s = s * jnp.float32(scale)
    s = jnp.where(mask_ref[...] != 0, jnp.float32(-1.0e9), s)

    # Online-softmax update.
    m_prev = m_sc[...]
    m_new = jnp.maximum(m_prev, jnp.max(s, axis=-1, keepdims=True))
    alpha = jnp.exp(m_prev - m_new)                  # rescale of old partials
    p = jnp.exp(s - m_new)
    l_sc[...] = alpha * l_sc[...] + jnp.sum(p, axis=-1, keepdims=True)
    acc_sc[...] = alpha * acc_sc[...] + jnp.einsum(
        "gqk,gkd->gqd", p.astype(v_ref.dtype), v_ref[...],
        preferred_element_type=jnp.float32)
    m_sc[...] = m_new

    @pl.when(kv == pl.num_programs(2) - 1)
    def _():
        # approx=True lowers to the EUP vrcp slot (otherwise idle here).
        inv_l = pl.reciprocal(l_sc[...], approx=True)
        o_ref[...] = (acc_sc[...] * inv_l).astype(o_ref.dtype)


def _largest_divisor(n, cap, multiple):
    best = None
    t = multiple
    while t <= cap:
        if n % t == 0:
            best = t
        t += multiple
    return best


def _pick_tile(n, cap, multiple):
    """Tile size: full dim if small, else the largest divisor <= cap that is a
    multiple of `multiple` (keeps the (8,128) BlockSpec constraint happy)."""
    if n <= cap:
        return n
    t = _largest_divisor(n, cap, multiple)
    return n if t is None else t


def _pick_group(bh, cap=8):
    """Largest divisor of BH that is <= cap (heads batched per grid step)."""
    g = 1
    for t in range(1, min(bh, cap) + 1):
        if bh % t == 0:
            g = t
    return g


def scaled_dot_product_attention(Q, K, V, attn_mask):
    """Q:[B,H,Lq,dk] K:[B,H,Lk,dk] V:[B,H,Lk,dv] attn_mask:[B,H,Lq,Lk] bool."""
    B, H, Lq, d_k = Q.shape
    Lk = K.shape[2]
    d_v = V.shape[3]
    BH = B * H

    q = Q.reshape(BH, Lq, d_k)
    k = K.reshape(BH, Lk, d_k)
    v = V.reshape(BH, Lk, d_v)
    # int8 mask stream: 4x less HBM/VMEM than int32.
    mask = attn_mask.reshape(BH, Lq, Lk).astype(jnp.int8)

    G = _pick_group(BH)                 # heads per grid step
    tile_q = _pick_tile(Lq, 256, 8)     # query-row tile
    tile_k = _pick_tile(Lk, 512, 128)   # key/value tile (online-softmax axis)

    grid = (BH // G, Lq // tile_q, Lk // tile_k)
    out_dtype = Q.dtype

    # TODO(synk): when d_v < 128, pack heads into the lane dimension of the
    # output to avoid masked partial stores (lane-dense out_spec).

    kernel = functools.partial(_flash_sdpa_kernel, scale=1.0 / math.sqrt(d_k))

    out = pl.pallas_call(
        kernel,
        out_shape=jax.ShapeDtypeStruct((BH, Lq, d_v), out_dtype),
        grid_spec=pltpu.PrefetchScalarGridSpec(
            num_scalar_prefetch=0,
            grid=grid,
            in_specs=[
                pl.BlockSpec((G, tile_q, d_k), lambda g, i, j: (g, i, 0)),
                pl.BlockSpec((G, tile_k, d_k), lambda g, i, j: (g, j, 0)),
                pl.BlockSpec((G, tile_k, d_v), lambda g, i, j: (g, j, 0)),
                pl.BlockSpec((G, tile_q, tile_k), lambda g, i, j: (g, i, j)),
            ],
            out_specs=pl.BlockSpec((G, tile_q, d_v), lambda g, i, j: (g, i, 0)),
            scratch_shapes=[
                pltpu.VMEM((G, tile_q, 1), jnp.float32),    # running max m
                pltpu.VMEM((G, tile_q, 1), jnp.float32),    # running sum l
                pltpu.VMEM((G, tile_q, d_v), jnp.float32),  # accumulator
            ],
        ),
        compiler_params=pltpu.CompilerParams(
            dimension_semantics=("parallel", "parallel", "arbitrary"),
            vmem_limit_bytes=48 * 1024 * 1024,  # fits v7x 64 MiB with headroom
        ),
    )(q, k, v, mask)

    return out.reshape(B, H, Lq, d_v)


def _reference(Q, K, V, attn_mask, d_k):
    scores = jnp.einsum("bhqd,bhkd->bhqk", Q.astype(jnp.float32),
                        K.astype(jnp.float32)) / jnp.sqrt(jnp.float32(d_k))
    scores = jnp.where(attn_mask, -1.0e9, scores)
    attn = jax.nn.softmax(scores, axis=-1)
    return jnp.einsum("bhqk,bhkd->bhqd", attn, V.astype(jnp.float32))


if __name__ == "__main__":
    B, H, Lq, Lk, d_k, d_v = 2, 2, 8, 8, 16, 16

    key = jax.random.PRNGKey(0)
    kq, kk, kv, km = jax.random.split(key, 4)
    Q = jax.random.normal(kq, (B, H, Lq, d_k), dtype=jnp.float32)
    K = jax.random.normal(kk, (B, H, Lk, d_k), dtype=jnp.float32)
    V = jax.random.normal(kv, (B, H, Lk, d_v), dtype=jnp.float32)
    attn_mask = jax.random.bernoulli(km, p=0.2, shape=(B, H, Lq, Lk))

    out = scaled_dot_product_attention(Q, K, V, attn_mask)
    out = jax.block_until_ready(out)

    ref = _reference(Q, K, V, attn_mask, d_k)
    assert out.shape == (B, H, Lq, d_v)
    # Tolerance accounts for the approximate EUP reciprocal in the softmax
    # normalization (relative error ~1e-3 worst case).
    assert jnp.allclose(out.astype(jnp.float32), ref, atol=2e-3, rtol=2e-3), \
        "mismatch vs reference"

    print("KERNEL_OK")
</pallas_src>

<mosaic_0001>
module attributes {stable_mosaic.version = 11 : i64} {
  func.func @_flash_sdpa_kernel(%arg0: i32, %arg1: i32, %arg2: i32, %arg3: memref<4x8x16xf32, #tpu.memory_space<vmem>>, %arg4: memref<4x8x16xf32, #tpu.memory_space<vmem>>, %arg5: memref<4x8x16xf32, #tpu.memory_space<vmem>>, %arg6: memref<4x8x8xi8, #tpu.memory_space<vmem>>, %arg7: memref<4x8x16xf32, #tpu.memory_space<vmem>>, %arg8: memref<4x8x1xf32, #tpu.memory_space<vmem>>, %arg9: memref<4x8x1xf32, #tpu.memory_space<vmem>>, %arg10: memref<4x8x16xf32, #tpu.memory_space<vmem>>) attributes {dimension_semantics = [#tpu.dimension_semantics<parallel>, #tpu.dimension_semantics<parallel>, #tpu.dimension_semantics<arbitrary>], iteration_bounds = array<i64: 1, 1, 1>, scalar_prefetch = 0 : i64, scratch_operands = 3 : i64, tpu.core_type = #tpu.core_type<tc>, window_params = [{transform_indices = @transform_0, window_bounds = array<i64: 4, 8, 16>}, {transform_indices = @transform_1, window_bounds = array<i64: 4, 8, 16>}, {transform_indices = @transform_2, window_bounds = array<i64: 4, 8, 16>}, {transform_indices = @transform_3, window_bounds = array<i64: 4, 8, 8>}, {transform_indices = @transform_4, window_bounds = array<i64: 4, 8, 16>}]} {
    %c0_i32 = arith.constant 0 : i32
    %0 = arith.cmpi eq, %arg2, %c0_i32 : i32
    %1 = arith.extui %0 : i1 to i32
    %c0_i32_0 = arith.constant 0 : i32
    %2 = arith.cmpi ne, %1, %c0_i32_0 : i32
    scf.if %2 {
      %cst_37 = arith.constant 0xFF800000 : f32
      %39 = vector.broadcast %cst_37 : f32 to vector<4x8x1xf32>
      %c0_38 = arith.constant 0 : index
      %c0_39 = arith.constant 0 : index
      %c0_40 = arith.constant 0 : index
      %40 = vector.load %arg8[%c0_38, %c0_39, %c0_40] : memref<4x8x1xf32, #tpu.memory_space<vmem>>, vector<4x8x1xf32>
      tpu.vector_store %arg8[%c0_38, %c0_39, %c0_40], %39 {strides = array<i32>} : memref<4x8x1xf32, #tpu.memory_space<vmem>>, vector<4x8x1xf32>,
      %cst_41 = arith.constant 0.000000e+00 : f32
      %41 = vector.broadcast %cst_41 : f32 to vector<4x8x1xf32>
      %c0_42 = arith.constant 0 : index
      %c0_43 = arith.constant 0 : index
      %c0_44 = arith.constant 0 : index
      %42 = vector.load %arg9[%c0_42, %c0_43, %c0_44] : memref<4x8x1xf32, #tpu.memory_space<vmem>>, vector<4x8x1xf32>
      tpu.vector_store %arg9[%c0_42, %c0_43, %c0_44], %41 {strides = array<i32>} : memref<4x8x1xf32, #tpu.memory_space<vmem>>, vector<4x8x1xf32>,
      %cst_45 = arith.constant 0.000000e+00 : f32
      %43 = vector.broadcast %cst_45 : f32 to vector<4x8x16xf32>
      %c0_46 = arith.constant 0 : index
      %c0_47 = arith.constant 0 : index
      %c0_48 = arith.constant 0 : index
      %44 = vector.load %arg10[%c0_46, %c0_47, %c0_48] : memref<4x8x16xf32, #tpu.memory_space<vmem>>, vector<4x8x16xf32>
      tpu.vector_store %arg10[%c0_46, %c0_47, %c0_48], %43 {strides = array<i32>} : memref<4x8x16xf32, #tpu.memory_space<vmem>>, vector<4x8x16xf32>,
    } else {
    }
    %c0 = arith.constant 0 : index
    %c0_1 = arith.constant 0 : index
    %c0_2 = arith.constant 0 : index
    %3 = vector.load %arg3[%c0, %c0_1, %c0_2] : memref<4x8x16xf32, #tpu.memory_space<vmem>>, vector<4x8x16xf32>
    %c0_3 = arith.constant 0 : index
    %c0_4 = arith.constant 0 : index
    %c0_5 = arith.constant 0 : index
    %4 = vector.load %arg4[%c0_3, %c0_4, %c0_5] : memref<4x8x16xf32, #tpu.memory_space<vmem>>, vector<4x8x16xf32>
    "tpu.trace_start"() <{level = 10 : i32, message = "gqd,gkd->gqk"}> : () -> ()
    %cst = arith.constant dense<0.000000e+00> : vector<4x8x8xf32>
    %5 = tpu.matmul %3, %4, %cst {dimension_numbers = #tpu.dot_dimension_numbers<[2], [2], [1], [1], [0, 0, 0, 1, 1, 1], [0], [0]>} : vector<4x8x16xf32>, vector<4x8x16xf32>, vector<4x8x8xf32> -> vector<4x8x8xf32>
    "tpu.trace_stop"() : () -> ()
    %cst_6 = arith.constant 2.500000e-01 : f32
    %6 = vector.broadcast %cst_6 : f32 to vector<4x8x8xf32>
    %7 = arith.mulf %5, %6 : vector<4x8x8xf32>
    %c0_7 = arith.constant 0 : index
    %c0_8 = arith.constant 0 : index
    %c0_9 = arith.constant 0 : index
    %8 = vector.load %arg6[%c0_7, %c0_8, %c0_9] : memref<4x8x8xi8, #tpu.memory_space<vmem>>, vector<4x8x8xi8>
    %c0_i8 = arith.constant 0 : i8
    %9 = vector.broadcast %c0_i8 : i8 to vector<4x8x8xi8>
    %10 = arith.cmpi ne, %8, %9 : vector<4x8x8xi8>
    %cst_10 = arith.constant -1.000000e+09 : f32
    %11 = vector.broadcast %cst_10 : f32 to vector<4x8x8xf32>
    %12 = arith.select %10, %11, %7 : vector<4x8x8xi1>, vector<4x8x8xf32>
    %c0_11 = arith.constant 0 : index
    %c0_12 = arith.constant 0 : index
    %c0_13 = arith.constant 0 : index
    %13 = vector.load %arg8[%c0_11, %c0_12, %c0_13] : memref<4x8x1xf32, #tpu.memory_space<vmem>>, vector<4x8x1xf32>
    %cst_14 = arith.constant dense<0xFF800000> : vector<4x8xf32>
    %14 = vector.multi_reduction <maximumf>, %12, %cst_14 [2] : vector<4x8x8xf32> to vector<4x8xf32>
    %15 = vector.shape_cast %14 : vector<4x8xf32> to vector<4x8x1xf32>
    %16 = arith.maximumf %13, %15 : vector<4x8x1xf32>
    %17 = arith.subf %13, %16 : vector<4x8x1xf32>
    %18 = math.exp %17 : vector<4x8x1xf32>
    %19 = vector.broadcast %16 : vector<4x8x1xf32> to vector<4x8x8xf32>
    %20 = arith.subf %12, %19 : vector<4x8x8xf32>
    %21 = math.exp %20 : vector<4x8x8xf32>
    %c0_15 = arith.constant 0 : index
    %c0_16 = arith.constant 0 : index
    %c0_17 = arith.constant 0 : index
    %22 = vector.load %arg9[%c0_15, %c0_16, %c0_17] : memref<4x8x1xf32, #tpu.memory_space<vmem>>, vector<4x8x1xf32>
    %23 = arith.mulf %18, %22 : vector<4x8x1xf32>
    %cst_18 = arith.constant dense<0.000000e+00> : vector<4x8xf32>
    %24 = vector.multi_reduction <add>, %21, %cst_18 [2] : vector<4x8x8xf32> to vector<4x8xf32>
    %25 = vector.shape_cast %24 : vector<4x8xf32> to vector<4x8x1xf32>
    %26 = arith.addf %23, %25 : vector<4x8x1xf32>
    %c0_19 = arith.constant 0 : index
    %c0_20 = arith.constant 0 : index
    %c0_21 = arith.constant 0 : index
    %27 = vector.load %arg9[%c0_19, %c0_20, %c0_21] : memref<4x8x1xf32, #tpu.memory_space<vmem>>, vector<4x8x1xf32>
    tpu.vector_store %arg9[%c0_19, %c0_20, %c0_21], %26 {strides = array<i32>} : memref<4x8x1xf32, #tpu.memory_space<vmem>>, vector<4x8x1xf32>,
    %c0_22 = arith.constant 0 : index
    %c0_23 = arith.constant 0 : index
    %c0_24 = arith.constant 0 : index
    %28 = vector.load %arg10[%c0_22, %c0_23, %c0_24] : memref<4x8x16xf32, #tpu.memory_space<vmem>>, vector<4x8x16xf32>
    %29 = vector.broadcast %18 : vector<4x8x1xf32> to vector<4x8x16xf32>
    %30 = arith.mulf %29, %28 : vector<4x8x16xf32>
    %c0_25 = arith.constant 0 : index
    %c0_26 = arith.constant 0 : index
    %c0_27 = arith.constant 0 : index
    %31 = vector.load %arg5[%c0_25, %c0_26, %c0_27] : memref<4x8x16xf32, #tpu.memory_space<vmem>>, vector<4x8x16xf32>
    "tpu.trace_start"() <{level = 10 : i32, message = "gqk,gkd->gqd"}> : () -> ()
    %cst_28 = arith.constant dense<0.000000e+00> : vector<4x8x16xf32>
    %32 = tpu.matmul %21, %31, %cst_28 {dimension_numbers = #tpu.dot_dimension_numbers<[2], [1], [1], [2], [0, 0, 0, 1, 1, 2], [0], [0]>} : vector<4x8x8xf32>, vector<4x8x16xf32>, vector<4x8x16xf32> -> vector<4x8x16xf32>
    "tpu.trace_stop"() : () -> ()
    %33 = arith.addf %30, %32 : vector<4x8x16xf32>
    %c0_29 = arith.constant 0 : index
    %c0_30 = arith.constant 0 : index
    %c0_31 = arith.constant 0 : index
    %34 = vector.load %arg10[%c0_29, %c0_30, %c0_31] : memref<4x8x16xf32, #tpu.memory_space<vmem>>, vector<4x8x16xf32>
    tpu.vector_store %arg10[%c0_29, %c0_30, %c0_31], %33 {strides = array<i32>} : memref<4x8x16xf32, #tpu.memory_space<vmem>>, vector<4x8x16xf32>,
    %c0_32 = arith.constant 0 : index
    %c0_33 = arith.constant 0 : index
    %c0_34 = arith.constant 0 : index
    %35 = vector.load %arg8[%c0_32, %c0_33, %c0_34] : memref<4x8x1xf32, #tpu.memory_space<vmem>>, vector<4x8x1xf32>
    tpu.vector_store %arg8[%c0_32, %c0_33, %c0_34], %16 {strides = array<i32>} : memref<4x8x1xf32, #tpu.memory_space<vmem>>, vector<4x8x1xf32>,
    %c0_i32_35 = arith.constant 0 : i32
    %36 = arith.cmpi eq, %arg2, %c0_i32_35 : i32
    %37 = arith.extui %36 : i1 to i32
    %c0_i32_36 = arith.constant 0 : i32
    %38 = arith.cmpi ne, %37, %c0_i32_36 : i32
    scf.if %38 {
      %c0_37 = arith.constant 0 : index
      %c0_38 = arith.constant 0 : index
      %c0_39 = arith.constant 0 : index
      %39 = vector.load %arg9[%c0_37, %c0_38, %c0_39] : memref<4x8x1xf32, #tpu.memory_space<vmem>>, vector<4x8x1xf32>
      %40 = tpu.reciprocal %39 {approx = true} : vector<4x8x1xf32> -> vector<4x8x1xf32>
      %c0_40 = arith.constant 0 : index
      %c0_41 = arith.constant 0 : index
      %c0_42 = arith.constant 0 : index
      %41 = vector.load %arg10[%c0_40, %c0_41, %c0_42] : memref<4x8x16xf32, #tpu.memory_space<vmem>>, vector<4x8x16xf32>
      %42 = vector.broadcast %40 : vector<4x8x1xf32> to vector<4x8x16xf32>
      %43 = arith.mulf %41, %42 : vector<4x8x16xf32>
      %c0_43 = arith.constant 0 : index
      %c0_44 = arith.constant 0 : index
      %c0_45 = arith.constant 0 : index
      %44 = vector.load %arg7[%c0_43, %c0_44, %c0_45] : memref<4x8x16xf32, #tpu.memory_space<vmem>>, vector<4x8x16xf32>
      tpu.vector_store %arg7[%c0_43, %c0_44, %c0_45], %43 {strides = array<i32>} : memref<4x8x16xf32, #tpu.memory_space<vmem>>, vector<4x8x16xf32>,
    } else {
    }
    return
  }
  func.func @transform_0(%arg0: i32, %arg1: i32, %arg2: i32) -> (i32, i32, i32) {
    %c0_i32 = arith.constant 0 : i32
    %c0_i32_0 = arith.constant 0 : i32
    return %arg0, %arg1, %c0_i32 : i32, i32, i32
  }
  func.func @transform_1(%arg0: i32, %arg1: i32, %arg2: i32) -> (i32, i32, i32) {
    %c0_i32 = arith.constant 0 : i32
    %c0_i32_0 = arith.constant 0 : i32
    return %arg0, %arg2, %c0_i32 : i32, i32, i32
  }
  func.func @transform_2(%arg0: i32, %arg1: i32, %arg2: i32) -> (i32, i32, i32) {
    %c0_i32 = arith.constant 0 : i32
    %c0_i32_0 = arith.constant 0 : i32
    return %arg0, %arg2, %c0_i32 : i32, i32, i32
  }
  func.func @transform_3(%arg0: i32, %arg1: i32, %arg2: i32) -> (i32, i32, i32) {
    %c0_i32 = arith.constant 0 : i32
    return %arg0, %arg1, %arg2 : i32, i32, i32
  }
  func.func @transform_4(%arg0: i32, %arg1: i32, %arg2: i32) -> (i32, i32, i32) {
    %c0_i32 = arith.constant 0 : i32
    %c0_i32_0 = arith.constant 0 : i32
    return %arg0, %arg1, %c0_i32 : i32, i32, i32
  }
}

</mosaic_0001>

<llo_original>
// kernel: tpu_custom_call.1
$region0: #{tpu_custom_call.1}
  #allocation0 [shape = 'u32[]', space=smem, size = 0x4, offset = 0x4, fixed_abs, tag = 'smem constant byte address 0x4 - core index']
  #allocation1 [shape = 'u32[144,128]{1,0:T(1,128)}', space=vmem, size = 0x12000, scoped, tag = 'internal scratch']
  #allocation2 [shape = 'f32[4,8,1]{2,1,0:T(8,128)}', space=vmem, size = 0x4000, scoped, tag = 'scratch operand']
  #allocation3 [shape = 'f32[4,8,1]{2,1,0:T(8,128)}', space=vmem, size = 0x4000, scoped, tag = 'scratch operand']
  #allocation4 [shape = 'f32[4,8,16]{2,1,0:T(8,128)}', space=vmem, size = 0x4000, scoped, tag = 'scratch operand']
  %s0 = inlined_call_operand.hbm [shape: f32[4,8,16], index: 0, kind: input, shape index: {}]
  %s1 = inlined_call_operand.hbm [shape: f32[4,8,16], index: 1, kind: input, shape index: {}]
  %s2 = inlined_call_operand.hbm [shape: f32[4,8,16], index: 2, kind: input, shape index: {}]
  %s3 = inlined_call_operand.vmem [shape: s8[4,8,8], index: 3, kind: input, shape index: {}]
  %s4 = inlined_call_operand.hbm [shape: f32[4,8,16], index: 4, kind: output, shape index: {}]
  %s5 = sld [smem:[#allocation0]]
  $region46: #{tpu_custom_call.1} parent=0
    _
  %s7 = ssub.s32 1, %s5
  %s8 = scalar_select 0, %s7, %s5
  $region1: #{tpu_custom_call.1} parent=0
    #allocation5 [shape = 'u8[16384]{0}', space=vmem, size = 0x4000, scoped, tag = 'input window, operand 0, single buffered']
    #allocation6 [shape = 's32[1]{0}', space=sflag, size = 0x4, scoped, tag = 'scoped memory for tpu_custom_call.1']
    #allocation7 [shape = 's32[1]{0}', space=sflag, size = 0x4, scoped, tag = 'scoped memory for tpu_custom_call.1']
    #allocation8 [shape = 'u8[16384]{0}', space=vmem, size = 0x4000, scoped, tag = 'input window, operand 1, single buffered']
    #allocation9 [shape = 's32[1]{0}', space=sflag, size = 0x4, scoped, tag = 'scoped memory for tpu_custom_call.1']
    #allocation10 [shape = 'u8[16384]{0}', space=vmem, size = 0x4000, scoped, tag = 'input window, operand 2, single buffered']
    #allocation11 [shape = 'u8[16384]{0}', space=vmem, size = 0x4000, scoped, tag = 'output window, operand 0, single buffered']
    %9 = vsyncpa [#allocation6], 0
    %10 = vsyncpa [#allocation9], 0
    %11 = vsyncpa [#allocation7], 0
    // Predicated region
    $region2: #{tpu_custom_call.1} parent=1 // pred_check
      _
    $region3: #{tpu_custom_call.1} parent=1 // pred_check_branch
      %13 = sbr.rel (0) target = $region5
    $region4: #{tpu_custom_call.1} parent=1 // pred_region
      %s15 = ssub.s32 512, 512
      %16 = vsyncadd [#allocation6], %s15
      %s17 = sshll.u32 [#allocation5], 4
      %s18 = int_to_ptr.vmem [resolvable:$true] %s17
      %23 = dma.hbm_to_vmem [thread:$0]  %s0, 512, %s18, [#allocation6], 128, 128, 8
    $region5: #{tpu_custom_call.1} parent=1 // pred_fallthru
      _
    // Predicated region
    $region6: #{tpu_custom_call.1} parent=1 // pred_check
      _
    $region7: #{tpu_custom_call.1} parent=1 // pred_check_branch
      %25 = sbr.rel (0) target = $region9
    $region8: #{tpu_custom_call.1} parent=1 // pred_region
      %s27 = ssub.s32 512, 512
      %28 = vsyncadd [#allocation9], %s27
      %s29 = sshll.u32 [#allocation8], 4
      %s30 = int_to_ptr.vmem [resolvable:$true] %s29
      %35 = dma.hbm_to_vmem [thread:$0]  %s1, 512, %s30, [#allocation9], 128, 128, 8
    $region9: #{tpu_custom_call.1} parent=1 // pred_fallthru
      _
    // Predicated region
    $region10: #{tpu_custom_call.1} parent=1 // pred_check
      _
    $region11: #{tpu_custom_call.1} parent=1 // pred_check_branch
      %37 = sbr.rel (0) target = $region13
    $region12: #{tpu_custom_call.1} parent=1 // pred_region
      %s39 = ssub.s32 512, 512
      %40 = vsyncadd [#allocation9], %s39
      %s41 = sshll.u32 [#allocation10], 4
      %s42 = int_to_ptr.vmem [resolvable:$true] %s41
      %47 = dma.hbm_to_vmem [thread:$0]  %s2, 512, %s42, [#allocation9], 128, 128, 8
    $region13: #{tpu_custom_call.1} parent=1 // pred_fallthru
      _
    // Predicated region
    $region14: #{tpu_custom_call.1} parent=1 // pred_check
      _
    $region15: #{tpu_custom_call.1} parent=1 // pred_check_branch
      %49 = sbr.rel (0) target = $region17
    $region16: #{tpu_custom_call.1} parent=1 // pred_region
      _
    $region17: #{tpu_custom_call.1} parent=1 // pred_fallthru
      _
    // Predicated region
    $region18: #{tpu_custom_call.1} parent=1 // pred_check
      _
    $region19: #{tpu_custom_call.1} parent=1 // pred_check_branch
      %51 = sbr.rel (0) target = $region21
    $region20: #{tpu_custom_call.1} parent=1 // pred_region
      %52 = dma.done [#allocation6], 512
    $region21: #{tpu_custom_call.1} parent=1 // pred_fallthru
      _
    // Predicated region
    $region22: #{tpu_custom_call.1} parent=1 // pred_check
      _
    $region23: #{tpu_custom_call.1} parent=1 // pred_check_branch
      %54 = sbr.rel (0) target = $region25
    $region24: #{tpu_custom_call.1} parent=1 // pred_region
      %55 = dma.done [#allocation9], 512
    $region25: #{tpu_custom_call.1} parent=1 // pred_fallthru
      _
    // Predicated region
    $region26: #{tpu_custom_call.1} parent=1 // pred_check
      _
    $region27: #{tpu_custom_call.1} parent=1 // pred_check_branch
      %57 = sbr.rel (0) target = $region29
    $region28: #{tpu_custom_call.1} parent=1 // pred_region
      %58 = dma.done [#allocation9], 512
    $region29: #{tpu_custom_call.1} parent=1 // pred_fallthru
      _
    %p61 = scmp.eq.s32.totalorder 0, 0
    // Predicated region
    $region30: #{tpu_custom_call.1} parent=1 // pred_check
      %p62 = pneg %p61
    $region31: #{tpu_custom_call.1} parent=1 // pred_check_branch
      %64 = sbr.rel (%p62) target = $region33
    $region32: #{tpu_custom_call.1} parent=1 // pred_region
      %vm65 = vcmask 7168
      %66 = vst.msk [vmem:[#allocation2] sm:$0xff] %vm65, -inf
      %67 = vst.msk [vmem:[#allocation2 + $0x8] sm:$0xff] %vm65, -inf
      %68 = vst.msk [vmem:[#allocation2 + $0x10] sm:$0xff] %vm65, -inf
      %69 = vst.msk [vmem:[#allocation2 + $0x18] sm:$0xff] %vm65, -inf
      %70 = vst.msk [vmem:[#allocation3] sm:$0xff] %vm65, 0.0
      %71 = vst.msk [vmem:[#allocation3 + $0x8] sm:$0xff] %vm65, 0.0
      %72 = vst.msk [vmem:[#allocation3 + $0x10] sm:$0xff] %vm65, 0.0
      %73 = vst.msk [vmem:[#allocation3 + $0x18] sm:$0xff] %vm65, 0.0
      %vm74 = vcmask 130048
      %75 = vst.msk [vmem:[#allocation4] sm:$0xff] %vm74, 0.0
      %76 = vst.msk [vmem:[#allocation4 + $0x8] sm:$0xff] %vm74, 0.0
      %77 = vst.msk [vmem:[#allocation4 + $0x10] sm:$0xff] %vm74, 0.0
      %78 = vst.msk [vmem:[#allocation4 + $0x18] sm:$0xff] %vm74, 0.0
    $region33: #{tpu_custom_call.1} parent=1 // pred_fallthru
      _
    %v79 = vld [vmem:[#allocation5] sm:$0xff]
    %v80 = vld [vmem:[#allocation5 + $0x8] sm:$0xff]
    %v81 = vld [vmem:[#allocation5 + $0x10] sm:$0xff]
    %v82 = vld [vmem:[#allocation5 + $0x18] sm:$0xff]
    %v83 = vld [vmem:[#allocation8] sm:$0xff]
    %v84 = vld [vmem:[#allocation8 + $0x8] sm:$0xff]
    %v85 = vld [vmem:[#allocation8 + $0x10] sm:$0xff]
    %v86 = vld [vmem:[#allocation8 + $0x18] sm:$0xff]
    %vm87 = vcmask 130048
    %v89 = vsel %vm87, %v79, 0
    %v92 = vsel %vm87, %v83, 0
    %94 = vmatprep.subr.mxu0 0.0
    %95 = vmatpush1.xpose.msra.mxu0 %v92
    %96 = vmatprep.subr.mxu0 0.0
    %97 = vmatpush1.xpose.msra.mxu0 0.0
    %98 = vmatprep.subr.mxu0 0.0
    %99 = vmatpush1.xpose.msra.mxu0 0.0
    %100 = vmatprep.subr.mxu0 0.0
    %101 = vmatpush1.xpose.msra.mxu0 0.0
    %102 = vmatprep.subr.mxu0 0.0
    %103 = vmatpush1.xpose.msra.mxu0 0.0
    %104 = vmatprep.subr.mxu0 0.0
    %105 = vmatpush1.xpose.msra.mxu0 0.0
    %106 = vmatprep.subr.mxu0 0.0
    %107 = vmatpush1.xpose.msra.mxu0 0.0
    %108 = vmatprep.subr.mxu0 0.0
    %109 = vmatpush1.xpose.msra.mxu0 0.0
    %110 = vmatprep.subr.mxu0 0.0
    %111 = vmatpush1.xpose.msra.mxu0 0.0
    %112 = vmatprep.subr.mxu0 0.0
    %113 = vmatpush1.xpose.msra.mxu0 0.0
    %114 = vmatprep.subr.mxu0 0.0
    %115 = vmatpush1.xpose.msra.mxu0 0.0
    %116 = vmatprep.subr.mxu0 0.0
    %117 = vmatpush1.xpose.msra.mxu0 0.0
    %118 = vmatprep.subr.mxu0 0.0
    %119 = vmatpush1.xpose.msra.mxu0 0.0
    %120 = vmatprep.subr.mxu0 0.0
    %121 = vmatpush1.xpose.msra.mxu0 0.0
    %122 = vmatprep.subr.mxu0 0.0
    %123 = vmatpush1.xpose.msra.mxu0 0.0
    %124 = vmatprep.subr.mxu0 0.0
    %125 = vmatpush1.xpose.msra.mxu0 0.0
    %126 = vmatprep.subr.mxu0 0.0
    %127 = vmatpush1.xpose.msra.mxu0 0.0
    %128 = vmatprep.subr.mxu0 0.0
    %129 = vmatpush1.xpose.msra.mxu0 0.0
    %130 = vmatprep.subr.mxu0 0.0
    %131 = vmatpush1.xpose.msra.mxu0 0.0
    %132 = vmatprep.subr.mxu0 0.0
    %133 = vmatpush1.xpose.msra.mxu0 0.0
    %134 = vmatprep.subr.mxu0 0.0
    %135 = vmatpush1.xpose.msra.mxu0 0.0
    %136 = vmatprep.subr.mxu0 0.0
    %137 = vmatpush1.xpose.msra.mxu0 0.0
    %138 = vmatprep.subr.mxu0 0.0
    %139 = vmatpush1.xpose.msra.mxu0 0.0
    %140 = vmatprep.subr.mxu0 0.0
    %141 = vmatpush1.xpose.msra.mxu0 0.0
    %142 = vmatprep.subr.mxu0 0.0
    %143 = vmatpush1.xpose.msra.mxu0 0.0
    %144 = vmatprep.subr.mxu0 0.0
    %145 = vmatpush1.xpose.msra.mxu0 0.0
    %146 = vmatprep.subr.mxu0 0.0
    %147 = vmatpush1.xpose.msra.mxu0 0.0
    %148 = vmatprep.subr.mxu0 0.0
    %149 = vmatpush1.xpose.msra.mxu0 0.0
    %150 = vmatprep.subr.mxu0 0.0
    %151 = vmatpush1.xpose.msra.mxu0 0.0
    %152 = vmatprep.subr.mxu0 0.0
    %153 = vmatpush1.xpose.msra.mxu0 0.0
    %154 = vmatprep.subr.mxu0 0.0
    %155 = vmatpush1.xpose.msra.mxu0 0.0
    %156 = vmatprep.subr.mxu0 0.0
    %157 = vmatpush1.xpose.msra.mxu0 0.0
    %158 = vmatprep.mubr.f32.mxu0 0.0
    %159 = vmatmul.mubr.f32.gmra.mrb[0].mxu0 %v89
    %v160 = vpop.f32.mrb[0].mxu0
    %v161 = vadd.f32 0.0, %v160
    %v162 = vpop.f32.mrb[0].mxu0
    %163 = vdwg.mxu0
    %v165 = vsel %vm87, %v80, 0
    %v168 = vsel %vm87, %v84, 0
    %170 = vmatprep.subr.mxu0 0.0
    %171 = vmatpush1.xpose.msra.mxu0 %v168
    %172 = vmatprep.subr.mxu0 0.0
    %173 = vmatpush1.xpose.msra.mxu0 0.0
    %174 = vmatprep.subr.mxu0 0.0
    %175 = vmatpush1.xpose.msra.mxu0 0.0
    %176 = vmatprep.subr.mxu0 0.0
    %177 = vmatpush1.xpose.msra.mxu0 0.0
    %178 = vmatprep.subr.mxu0 0.0
    %179 = vmatpush1.xpose.msra.mxu0 0.0
    %180 = vmatprep.subr.mxu0 0.0
    %181 = vmatpush1.xpose.msra.mxu0 0.0
    %182 = vmatprep.subr.mxu0 0.0
    %183 = vmatpush1.xpose.msra.mxu0 0.0
    %184 = vmatprep.subr.mxu0 0.0
    %185 = vmatpush1.xpose.msra.mxu0 0.0
    %186 = vmatprep.subr.mxu0 0.0
    %187 = vmatpush1.xpose.msra.mxu0 0.0
    %188 = vmatprep.subr.mxu0 0.0
    %189 = vmatpush1.xpose.msra.mxu0 0.0
    %190 = vmatprep.subr.mxu0 0.0
    %191 = vmatpush1.xpose.msra.mxu0 0.0
    %192 = vmatprep.subr.mxu0 0.0
    %193 = vmatpush1.xpose.msra.mxu0 0.0
    %194 = vmatprep.subr.mxu0 0.0
    %195 = vmatpush1.xpose.msra.mxu0 0.0
    %196 = vmatprep.subr.mxu0 0.0
    %197 = vmatpush1.xpose.msra.mxu0 0.0
    %198 = vmatprep.subr.mxu0 0.0
    %199 = vmatpush1.xpose.msra.mxu0 0.0
    %200 = vmatprep.subr.mxu0 0.0
    %201 = vmatpush1.xpose.msra.mxu0 0.0
    %202 = vmatprep.subr.mxu0 0.0
    %203 = vmatpush1.xpose.msra.mxu0 0.0
    %204 = vmatprep.subr.mxu0 0.0
    %205 = vmatpush1.xpose.msra.mxu0 0.0
    %206 = vmatprep.subr.mxu0 0.0
    %207 = vmatpush1.xpose.msra.mxu0 0.0
    %208 = vmatprep.subr.mxu0 0.0
    %209 = vmatpush1.xpose.msra.mxu0 0.0
    %210 = vmatprep.subr.mxu0 0.0
    %211 = vmatpush1.xpose.msra.mxu0 0.0
    %212 = vmatprep.subr.mxu0 0.0
    %213 = vmatpush1.xpose.msra.mxu0 0.0
    %214 = vmatprep.subr.mxu0 0.0
    %215 = vmatpush1.xpose.msra.mxu0 0.0
    %216 = vmatprep.subr.mxu0 0.0
    %217 = vmatpush1.xpose.msra.mxu0 0.0
    %218 = vmatprep.subr.mxu0 0.0
    %219 = vmatpush1.xpose.msra.mxu0 0.0
    %220 = vmatprep.subr.mxu0 0.0
    %221 = vmatpush1.xpose.msra.mxu0 0.0
    %222 = vmatprep.subr.mxu0 0.0
    %223 = vmatpush1.xpose.msra.mxu0 0.0
    %224 = vmatprep.subr.mxu0 0.0
    %225 = vmatpush1.xpose.msra.mxu0 0.0
    %226 = vmatprep.subr.mxu0 0.0
    %227 = vmatpush1.xpose.msra.mxu0 0.0
    %228 = vmatprep.subr.mxu0 0.0
    %229 = vmatpush1.xpose.msra.mxu0 0.0
    %230 = vmatprep.subr.mxu0 0.0
    %231 = vmatpush1.xpose.msra.mxu0 0.0
    %232 = vmatprep.subr.mxu0 0.0
    %233 = vmatpush1.xpose.msra.mxu0 0.0
    %234 = vmatprep.mubr.f32.mxu0 0.0
    %235 = vmatmul.mubr.f32.gmra.mrb[0].mxu0 %v165
    %v236 = vpop.f32.mrb[0].mxu0
    %v237 = vadd.f32 0.0, %v236
    %v238 = vpop.f32.mrb[0].mxu0
    %239 = vdwg.mxu0
    %v241 = vsel %vm87, %v81, 0
    %v244 = vsel %vm87, %v85, 0
    %246 = vmatprep.subr.mxu0 0.0
    %247 = vmatpush1.xpose.msra.mxu0 %v244
    %248 = vmatprep.subr.mxu0 0.0
    %249 = vmatpush1.xpose.msra.mxu0 0.0
    %250 = vmatprep.subr.mxu0 0.0
    %251 = vmatpush1.xpose.msra.mxu0 0.0
    %252 = vmatprep.subr.mxu0 0.0
    %253 = vmatpush1.xpose.msra.mxu0 0.0
    %254 = vmatprep.subr.mxu0 0.0
    %255 = vmatpush1.xpose.msra.mxu0 0.0
    %256 = vmatprep.subr.mxu0 0.0
    %257 = vmatpush1.xpose.msra.mxu0 0.0
    %258 = vmatprep.subr.mxu0 0.0
    %259 = vmatpush1.xpose.msra.mxu0 0.0
    %260 = vmatprep.subr.mxu0 0.0
    %261 = vmatpush1.xpose.msra.mxu0 0.0
    %262 = vmatprep.subr.mxu0 0.0
    %263 = vmatpush1.xpose.msra.mxu0 0.0
    %264 = vmatprep.subr.mxu0 0.0
    %265 = vmatpush1.xpose.msra.mxu0 0.0
    %266 = vmatprep.subr.mxu0 0.0
    %267 = vmatpush1.xpose.msra.mxu0 0.0
    %268 = vmatprep.subr.mxu0 0.0
    %269 = vmatpush1.xpose.msra.mxu0 0.0
    %270 = vmatprep.subr.mxu0 0.0
    %271 = vmatpush1.xpose.msra.mxu0 0.0
    %272 = vmatprep.subr.mxu0 0.0
    %273 = vmatpush1.xpose.msra.mxu0 0.0
    %274 = vmatprep.subr.mxu0 0.0
    %275 = vmatpush1.xpose.msra.mxu0 0.0
    %276 = vmatprep.subr.mxu0 0.0
    %277 = vmatpush1.xpose.msra.mxu0 0.0
    %278 = vmatprep.subr.mxu0 0.0
    %279 = vmatpush1.xpose.msra.mxu0 0.0
    %280 = vmatprep.subr.mxu0 0.0
    %281 = vmatpush1.xpose.msra.mxu0 0.0
    %282 = vmatprep.subr.mxu0 0.0
    %283 = vmatpush1.xpose.msra.mxu0 0.0
    %284 = vmatprep.subr.mxu0 0.0
    %285 = vmatpush1.xpose.msra.mxu0 0.0
    %286 = vmatprep.subr.mxu0 0.0
    %287 = vmatpush1.xpose.msra.mxu0 0.0
    %288 = vmatprep.subr.mxu0 0.0
    %289 = vmatpush1.xpose.msra.mxu0 0.0
    %290 = vmatprep.subr.mxu0 0.0
    %291 = vmatpush1.xpose.msra.mxu0 0.0
    %292 = vmatprep.subr.mxu0 0.0
    %293 = vmatpush1.xpose.msra.mxu0 0.0
    %294 = vmatprep.subr.mxu0 0.0
    %295 = vmatpush1.xpose.msra.mxu0 0.0
    %296 = vmatprep.subr.mxu0 0.0
    %297 = vmatpush1.xpose.msra.mxu0 0.0
    %298 = vmatprep.subr.mxu0 0.0
    %299 = vmatpush1.xpose.msra.mxu0 0.0
    %300 = vmatprep.subr.mxu0 0.0
    %301 = vmatpush1.xpose.msra.mxu0 0.0
    %302 = vmatprep.subr.mxu0 0.0
    %303 = vmatpush1.xpose.msra.mxu0 0.0
    %304 = vmatprep.subr.mxu0 0.0
    %305 = vmatpush1.xpose.msra.mxu0 0.0
    %306 = vmatprep.subr.mxu0 0.0
    %307 = vmatpush1.xpose.msra.mxu0 0.0
    %308 = vmatprep.subr.mxu0 0.0
    %309 = vmatpush1.xpose.msra.mxu0 0.0
    %310 = vmatprep.mubr.f32.mxu0 0.0
    %311 = vmatmul.mubr.f32.gmra.mrb[0].mxu0 %v241
    %v312 = vpop.f32.mrb[0].mxu0
    %v313 = vadd.f32 0.0, %v312
    %v314 = vpop.f32.mrb[0].mxu0
    %315 = vdwg.mxu0
    %v317 = vsel %vm87, %v82, 0
    %v320 = vsel %vm87, %v86, 0
    %322 = vmatprep.subr.mxu0 0.0
    %323 = vmatpush1.xpose.msra.mxu0 %v320
    %324 = vmatprep.subr.mxu0 0.0
    %325 = vmatpush1.xpose.msra.mxu0 0.0
    %326 = vmatprep.subr.mxu0 0.0
    %327 = vmatpush1.xpose.msra.mxu0 0.0
    %328 = vmatprep.subr.mxu0 0.0
    %329 = vmatpush1.xpose.msra.mxu0 0.0
    %330 = vmatprep.subr.mxu0 0.0
    %331 = vmatpush1.xpose.msra.mxu0 0.0
    %332 = vmatprep.subr.mxu0 0.0
    %333 = vmatpush1.xpose.msra.mxu0 0.0
    %334 = vmatprep.subr.mxu0 0.0
    %335 = vmatpush1.xpose.msra.mxu0 0.0
    %336 = vmatprep.subr.mxu0 0.0
    %337 = vmatpush1.xpose.msra.mxu0 0.0
    %338 = vmatprep.subr.mxu0 0.0
    %339 = vmatpush1.xpose.msra.mxu0 0.0
    %340 = vmatprep.subr.mxu0 0.0
    %341 = vmatpush1.xpose.msra.mxu0 0.0
    %342 = vmatprep.subr.mxu0 0.0
    %343 = vmatpush1.xpose.msra.mxu0 0.0
    %344 = vmatprep.subr.mxu0 0.0
    %345 = vmatpush1.xpose.msra.mxu0 0.0
    %346 = vmatprep.subr.mxu0 0.0
    %347 = vmatpush1.xpose.msra.mxu0 0.0
    %348 = vmatprep.subr.mxu0 0.0
    %349 = vmatpush1.xpose.msra.mxu0 0.0
    %350 = vmatprep.subr.mxu0 0.0
    %351 = vmatpush1.xpose.msra.mxu0 0.0
    %352 = vmatprep.subr.mxu0 0.0
    %353 = vmatpush1.xpose.msra.mxu0 0.0
    %354 = vmatprep.subr.mxu0 0.0
    %355 = vmatpush1.xpose.msra.mxu0 0.0
    %356 = vmatprep.subr.mxu0 0.0
    %357 = vmatpush1.xpose.msra.mxu0 0.0
    %358 = vmatprep.subr.mxu0 0.0
    %359 = vmatpush1.xpose.msra.mxu0 0.0
    %360 = vmatprep.subr.mxu0 0.0
    %361 = vmatpush1.xpose.msra.mxu0 0.0
    %362 = vmatprep.subr.mxu0 0.0
    %363 = vmatpush1.xpose.msra.mxu0 0.0
    %364 = vmatprep.subr.mxu0 0.0
    %365 = vmatpush1.xpose.msra.mxu0 0.0
    %366 = vmatprep.subr.mxu0 0.0
    %367 = vmatpush1.xpose.msra.mxu0 0.0
    %368 = vmatprep.subr.mxu0 0.0
    %369 = vmatpush1.xpose.msra.mxu0 0.0
    %370 = vmatprep.subr.mxu0 0.0
    %371 = vmatpush1.xpose.msra.mxu0 0.0
    %372 = vmatprep.subr.mxu0 0.0
    %373 = vmatpush1.xpose.msra.mxu0 0.0
    %374 = vmatprep.subr.mxu0 0.0
    %375 = vmatpush1.xpose.msra.mxu0 0.0
    %376 = vmatprep.subr.mxu0 0.0
    %377 = vmatpush1.xpose.msra.mxu0 0.0
    %378 = vmatprep.subr.mxu0 0.0
    %379 = vmatpush1.xpose.msra.mxu0 0.0
    %380 = vmatprep.subr.mxu0 0.0
    %381 = vmatpush1.xpose.msra.mxu0 0.0
    %382 = vmatprep.subr.mxu0 0.0
    %383 = vmatpush1.xpose.msra.mxu0 0.0
    %384 = vmatprep.subr.mxu0 0.0
    %385 = vmatpush1.xpose.msra.mxu0 0.0
    %386 = vmatprep.mubr.f32.mxu0 0.0
    %387 = vmatmul.mubr.f32.gmra.mrb[0].mxu0 %v317
    %v388 = vpop.f32.mrb[0].mxu0
    %v389 = vadd.f32 0.0, %v388
    %v390 = vpop.f32.mrb[0].mxu0
    %391 = vdwg.mxu0
    %v392 = vmul.f32 %v161, 0.25
    %v393 = vmul.f32 %v237, 0.25
    %v394 = vmul.f32 %v313, 0.25
    %v395 = vmul.f32 %v389, 0.25
    %v396 = vld [vmem:[%s3] sm:$0x3]
    %v397 = vld [vmem:[%s3 + $0x2] sm:$0x3]
    %v398 = vld [vmem:[%s3 + $0x4] sm:$0x3]
    %v399 = vld [vmem:[%s3 + $0x6] sm:$0x3]
    %vm400 = vnez %v396
    %vm401 = vnez %v397
    %vm402 = vnez %v398
    %vm403 = vnez %v399
    %v404 = vsel %vm400, 16843009, 0
    %v405 = vsel %vm401, 16843009, 0
    %v406 = vsel %vm402, 16843009, 0
    %v407 = vsel %vm403, 16843009, 0
    %v408 = vunpack.c.0.s8 %v404
    %v409 = vunpack.c.0.s8 %v405
    %v410 = vunpack.c.0.s8 %v406
    %v411 = vunpack.c.0.s8 %v407
    %vm412 = vcmp.ne.s32.totalorder %v408, 0
    %vm413 = vcmp.ne.s32.totalorder %v409, 0
    %vm414 = vcmp.ne.s32.totalorder %v410, 0
    %vm415 = vcmp.ne.s32.totalorder %v411, 0
    %v416 = vsel %vm412, -1e+09, %v392
    %v417 = vsel %vm413, -1e+09, %v393
    %v418 = vsel %vm414, -1e+09, %v394
    %v419 = vsel %vm415, -1e+09, %v395
    %v420 = vld [vmem:[#allocation2] sm:$0xff]
    %v421 = vld [vmem:[#allocation2 + $0x8] sm:$0xff]
    %v422 = vld [vmem:[#allocation2 + $0x10] sm:$0xff]
    %v423 = vld [vmem:[#allocation2 + $0x18] sm:$0xff]
    %vm424 = vcmask 64512
    %v425 = vsel %vm424, %v416, -inf
    %426 = vmax.xlane.f32.xlu0 %v425
    %v427 = vpop.xlane.xlu0 %426
    %v428 = vsel %vm424, %v417, -inf
    %429 = vmax.xlane.f32.xlu0 %v428
    %v430 = vpop.xlane.xlu0 %429
    %v431 = vsel %vm424, %v418, -inf
    %432 = vmax.xlane.f32.xlu0 %v431
    %v433 = vpop.xlane.xlu0 %432
    %v434 = vsel %vm424, %v419, -inf
    %435 = vmax.xlane.f32.xlu0 %v434
    %v436 = vpop.xlane.xlu0 %435
    %v437 = vmax.f32 %v420, %v427
    %v438 = vmax.f32 %v421, %v430
    %v439 = vmax.f32 %v422, %v433
    %v440 = vmax.f32 %v423, %v436
    %v441 = vsub.f32 %v420, %v437
    %v442 = vsub.f32 %v421, %v438
    %v443 = vsub.f32 %v422, %v439
    %v444 = vsub.f32 %v423, %v440
    %v445 = vmul.f32 %v441, 1.442695
    %v446 = vpow.pop %v445
    %v447 = vmul.f32 %v442, 1.442695
    %v448 = vpow.pop %v447
    %v449 = vmul.f32 %v443, 1.442695
    %v450 = vpow.pop %v449
    %v451 = vmul.f32 %v444, 1.442695
    %v452 = vpow.pop %v451
    %454 = vset.pattern.permute.xlu0 0
    %455 = vperm.xlu0 %454, %v437
    %v456 = vpop.permute.xlu0 %455
    %459 = vset.pattern.permute.xlu0 0
    %460 = vperm.xlu0 %459, %v438
    %v461 = vpop.permute.xlu0 %460
    %464 = vset.pattern.permute.xlu0 0
    %465 = vperm.xlu0 %464, %v439
    %v466 = vpop.permute.xlu0 %465
    %469 = vset.pattern.permute.xlu0 0
    %470 = vperm.xlu0 %469, %v440
    %v471 = vpop.permute.xlu0 %470
    %v473 = vsub.f32 %v416, %v456
    %v474 = vsub.f32 %v417, %v461
    %v475 = vsub.f32 %v418, %v466
    %v476 = vsub.f32 %v419, %v471
    %v477 = vmul.f32 %v473, 1.442695
    %v478 = vpow.pop %v477
    %v479 = vmul.f32 %v474, 1.442695
    %v480 = vpow.pop %v479
    %v481 = vmul.f32 %v475, 1.442695
    %v482 = vpow.pop %v481
    %v483 = vmul.f32 %v476, 1.442695
    %v484 = vpow.pop %v483
    %v485 = vld [vmem:[#allocation3] sm:$0xff]
    %v486 = vld [vmem:[#allocation3 + $0x8] sm:$0xff]
    %v487 = vld [vmem:[#allocation3 + $0x10] sm:$0xff]
    %v488 = vld [vmem:[#allocation3 + $0x18] sm:$0xff]
    %v489 = vmul.f32 %v446, %v485
    %v490 = vmul.f32 %v448, %v486
    %v491 = vmul.f32 %v450, %v487
    %v492 = vmul.f32 %v452, %v488
    %v493 = vsel %vm424, %v478, 0.0
    %494 = vadd.xlane.f32.xlu0 %v493
    %v495 = vpop.xlane.xlu0 %494
    %v496 = vsel %vm424, %v480, 0.0
    %497 = vadd.xlane.f32.xlu0 %v496
    %v498 = vpop.xlane.xlu0 %497
    %v499 = vsel %vm424, %v482, 0.0
    %500 = vadd.xlane.f32.xlu0 %v499
    %v501 = vpop.xlane.xlu0 %500
    %v502 = vsel %vm424, %v484, 0.0
    %503 = vadd.xlane.f32.xlu0 %v502
    %v504 = vpop.xlane.xlu0 %503
    %v505 = vadd.f32 %v489, %v495
    %v506 = vadd.f32 %v490, %v498
    %v507 = vadd.f32 %v491, %v501
    %v508 = vadd.f32 %v492, %v504
    %vm509 = vcmask 7168
    %510 = vst.msk [vmem:[#allocation3] sm:$0xff] %vm509, %v505
    %511 = vst.msk [vmem:[#allocation3 + $0x8] sm:$0xff] %vm509, %v506
    %512 = vst.msk [vmem:[#allocation3 + $0x10] sm:$0xff] %vm509, %v507
    %513 = vst.msk [vmem:[#allocation3 + $0x18] sm:$0xff] %vm509, %v508
    %v514 = vld [vmem:[#allocation4] sm:$0xff]
    %v515 = vld [vmem:[#allocation4 + $0x8] sm:$0xff]
    %v516 = vld [vmem:[#allocation4 + $0x10] sm:$0xff]
    %v517 = vld [vmem:[#allocation4 + $0x18] sm:$0xff]
    %519 = vset.pattern.permute.xlu0 0
    %520 = vperm.xlu0 %519, %v446
    %v521 = vpop.permute.xlu0 %520
    %524 = vset.pattern.permute.xlu0 0
    %525 = vperm.xlu0 %524, %v448
    %v526 = vpop.permute.xlu0 %525
    %529 = vset.pattern.permute.xlu0 0
    %530 = vperm.xlu0 %529, %v450
    %v531 = vpop.permute.xlu0 %530
    %534 = vset.pattern.permute.xlu0 0
    %535 = vperm.xlu0 %534, %v452
    %v536 = vpop.permute.xlu0 %535
    %v538 = vmul.f32 %v521, %v514
    %v539 = vmul.f32 %v526, %v515
    %v540 = vmul.f32 %v531, %v516
    %v541 = vmul.f32 %v536, %v517
    %v542 = vld [vmem:[#allocation10] sm:$0xff]
    %v543 = vld [vmem:[#allocation10 + $0x8] sm:$0xff]
    %v544 = vld [vmem:[#allocation10 + $0x10] sm:$0xff]
    %v545 = vld [vmem:[#allocation10 + $0x18] sm:$0xff]
    %v547 = vsel %vm424, %v478, 0
    %549 = vmatprep.subr.mxu0 0.0
    %550 = vmatpush1.msra.mxu0 %v542
    %551 = vmatprep.subr.mxu0 0.0
    %552 = vmatpush1.msra.mxu0 0.0
    %553 = vmatprep.subr.mxu0 0.0
    %554 = vmatpush1.msra.mxu0 0.0
    %555 = vmatprep.subr.mxu0 0.0
    %556 = vmatpush1.msra.mxu0 0.0
    %557 = vmatprep.subr.mxu0 0.0
    %558 = vmatpush1.msra.mxu0 0.0
    %559 = vmatprep.subr.mxu0 0.0
    %560 = vmatpush1.msra.mxu0 0.0
    %561 = vmatprep.subr.mxu0 0.0
    %562 = vmatpush1.msra.mxu0 0.0
    %563 = vmatprep.subr.mxu0 0.0
    %564 = vmatpush1.msra.mxu0 0.0
    %565 = vmatprep.subr.mxu0 0.0
    %566 = vmatpush1.msra.mxu0 0.0
    %567 = vmatprep.subr.mxu0 0.0
    %568 = vmatpush1.msra.mxu0 0.0
    %569 = vmatprep.subr.mxu0 0.0
    %570 = vmatpush1.msra.mxu0 0.0
    %571 = vmatprep.subr.mxu0 0.0
    %572 = vmatpush1.msra.mxu0 0.0
    %573 = vmatprep.subr.mxu0 0.0
    %574 = vmatpush1.msra.mxu0 0.0
    %575 = vmatprep.subr.mxu0 0.0
    %576 = vmatpush1.msra.mxu0 0.0
    %577 = vmatprep.subr.mxu0 0.0
    %578 = vmatpush1.msra.mxu0 0.0
    %579 = vmatprep.subr.mxu0 0.0
    %580 = vmatpush1.msra.mxu0 0.0
    %581 = vmatprep.subr.mxu0 0.0
    %582 = vmatpush1.msra.mxu0 0.0
    %583 = vmatprep.subr.mxu0 0.0
    %584 = vmatpush1.msra.mxu0 0.0
    %585 = vmatprep.subr.mxu0 0.0
    %586 = vmatpush1.msra.mxu0 0.0
    %587 = vmatprep.subr.mxu0 0.0
    %588 = vmatpush1.msra.mxu0 0.0
    %589 = vmatprep.subr.mxu0 0.0
    %590 = vmatpush1.msra.mxu0 0.0
    %591 = vmatprep.subr.mxu0 0.0
    %592 = vmatpush1.msra.mxu0 0.0
    %593 = vmatprep.subr.mxu0 0.0
    %594 = vmatpush1.msra.mxu0 0.0
    %595 = vmatprep.subr.mxu0 0.0
    %596 = vmatpush1.msra.mxu0 0.0
    %597 = vmatprep.subr.mxu0 0.0
    %598 = vmatpush1.msra.mxu0 0.0
    %599 = vmatprep.subr.mxu0 0.0
    %600 = vmatpush1.msra.mxu0 0.0
    %601 = vmatprep.subr.mxu0 0.0
    %602 = vmatpush1.msra.mxu0 0.0
    %603 = vmatprep.subr.mxu0 0.0
    %604 = vmatpush1.msra.mxu0 0.0
    %605 = vmatprep.subr.mxu0 0.0
    %606 = vmatpush1.msra.mxu0 0.0
    %607 = vmatprep.subr.mxu0 0.0
    %608 = vmatpush1.msra.mxu0 0.0
    %609 = vmatprep.subr.mxu0 0.0
    %610 = vmatpush1.msra.mxu0 0.0
    %611 = vmatprep.subr.mxu0 0.0
    %612 = vmatpush1.msra.mxu0 0.0
    %613 = vmatprep.mubr.f32.mxu0 0.0
    %614 = vmatmul.mubr.f32.gmra.mrb[0].mxu0 %v547
    %v615 = vpop.f32.mrb[0].mxu0
    %v616 = vadd.f32 0.0, %v615
    %v617 = vpop.f32.mrb[0].mxu0
    %618 = vdwg.mxu0
    %v620 = vsel %vm424, %v480, 0
    %622 = vmatprep.subr.mxu0 0.0
    %623 = vmatpush1.msra.mxu0 %v543
    %624 = vmatprep.subr.mxu0 0.0
    %625 = vmatpush1.msra.mxu0 0.0
    %626 = vmatprep.subr.mxu0 0.0
    %627 = vmatpush1.msra.mxu0 0.0
    %628 = vmatprep.subr.mxu0 0.0
    %629 = vmatpush1.msra.mxu0 0.0
    %630 = vmatprep.subr.mxu0 0.0
    %631 = vmatpush1.msra.mxu0 0.0
    %632 = vmatprep.subr.mxu0 0.0
    %633 = vmatpush1.msra.mxu0 0.0
    %634 = vmatprep.subr.mxu0 0.0
    %635 = vmatpush1.msra.mxu0 0.0
    %636 = vmatprep.subr.mxu0 0.0
    %637 = vmatpush1.msra.mxu0 0.0
    %638 = vmatprep.subr.mxu0 0.0
    %639 = vmatpush1.msra.mxu0 0.0
    %640 = vmatprep.subr.mxu0 0.0
    %641 = vmatpush1.msra.mxu0 0.0
    %642 = vmatprep.subr.mxu0 0.0
    %643 = vmatpush1.msra.mxu0 0.0
    %644 = vmatprep.subr.mxu0 0.0
    %645 = vmatpush1.msra.mxu0 0.0
    %646 = vmatprep.subr.mxu0 0.0
    %647 = vmatpush1.msra.mxu0 0.0
    %648 = vmatprep.subr.mxu0 0.0
    %649 = vmatpush1.msra.mxu0 0.0
    %650 = vmatprep.subr.mxu0 0.0
    %651 = vmatpush1.msra.mxu0 0.0
    %652 = vmatprep.subr.mxu0 0.0
    %653 = vmatpush1.msra.mxu0 0.0
    %654 = vmatprep.subr.mxu0 0.0
    %655 = vmatpush1.msra.mxu0 0.0
    %656 = vmatprep.subr.mxu0 0.0
    %657 = vmatpush1.msra.mxu0 0.0
    %658 = vmatprep.subr.mxu0 0.0
    %659 = vmatpush1.msra.mxu0 0.0
    %660 = vmatprep.subr.mxu0 0.0
    %661 = vmatpush1.msra.mxu0 0.0
    %662 = vmatprep.subr.mxu0 0.0
    %663 = vmatpush1.msra.mxu0 0.0
    %664 = vmatprep.subr.mxu0 0.0
    %665 = vmatpush1.msra.mxu0 0.0
    %666 = vmatprep.subr.mxu0 0.0
    %667 = vmatpush1.msra.mxu0 0.0
    %668 = vmatprep.subr.mxu0 0.0
    %669 = vmatpush1.msra.mxu0 0.0
    %670 = vmatprep.subr.mxu0 0.0
    %671 = vmatpush1.msra.mxu0 0.0
    %672 = vmatprep.subr.mxu0 0.0
    %673 = vmatpush1.msra.mxu0 0.0
    %674 = vmatprep.subr.mxu0 0.0
    %675 = vmatpush1.msra.mxu0 0.0
    %676 = vmatprep.subr.mxu0 0.0
    %677 = vmatpush1.msra.mxu0 0.0
    %678 = vmatprep.subr.mxu0 0.0
    %679 = vmatpush1.msra.mxu0 0.0
    %680 = vmatprep.subr.mxu0 0.0
    %681 = vmatpush1.msra.mxu0 0.0
    %682 = vmatprep.subr.mxu0 0.0
    %683 = vmatpush1.msra.mxu0 0.0
    %684 = vmatprep.subr.mxu0 0.0
    %685 = vmatpush1.msra.mxu0 0.0
    %686 = vmatprep.mubr.f32.mxu0 0.0
    %687 = vmatmul.mubr.f32.gmra.mrb[0].mxu0 %v620
    %v688 = vpop.f32.mrb[0].mxu0
    %v689 = vadd.f32 0.0, %v688
    %v690 = vpop.f32.mrb[0].mxu0
    %691 = vdwg.mxu0
    %v693 = vsel %vm424, %v482, 0
    %695 = vmatprep.subr.mxu0 0.0
    %696 = vmatpush1.msra.mxu0 %v544
    %697 = vmatprep.subr.mxu0 0.0
    %698 = vmatpush1.msra.mxu0 0.0
    %699 = vmatprep.subr.mxu0 0.0
    %700 = vmatpush1.msra.mxu0 0.0
    %701 = vmatprep.subr.mxu0 0.0
    %702 = vmatpush1.msra.mxu0 0.0
    %703 = vmatprep.subr.mxu0 0.0
    %704 = vmatpush1.msra.mxu0 0.0
    %705 = vmatprep.subr.mxu0 0.0
    %706 = vmatpush1.msra.mxu0 0.0
    %707 = vmatprep.subr.mxu0 0.0
    %708 = vmatpush1.msra.mxu0 0.0
    %709 = vmatprep.subr.mxu0 0.0
    %710 = vmatpush1.msra.mxu0 0.0
    %711 = vmatprep.subr.mxu0 0.0
    %712 = vmatpush1.msra.mxu0 0.0
    %713 = vmatprep.subr.mxu0 0.0
    %714 = vmatpush1.msra.mxu0 0.0
    %715 = vmatprep.subr.mxu0 0.0
    %716 = vmatpush1.msra.mxu0 0.0
    %717 = vmatprep.subr.mxu0 0.0
    %718 = vmatpush1.msra.mxu0 0.0
    %719 = vmatprep.subr.mxu0 0.0
    %720 = vmatpush1.msra.mxu0 0.0
    %721 = vmatprep.subr.mxu0 0.0
    %722 = vmatpush1.msra.mxu0 0.0
    %723 = vmatprep.subr.mxu0 0.0
    %724 = vmatpush1.msra.mxu0 0.0
    %725 = vmatprep.subr.mxu0 0.0
    %726 = vmatpush1.msra.mxu0 0.0
    %727 = vmatprep.subr.mxu0 0.0
    %728 = vmatpush1.msra.mxu0 0.0
    %729 = vmatprep.subr.mxu0 0.0
    %730 = vmatpush1.msra.mxu0 0.0
    %731 = vmatprep.subr.mxu0 0.0
    %732 = vmatpush1.msra.mxu0 0.0
    %733 = vmatprep.subr.mxu0 0.0
    %734 = vmatpush1.msra.mxu0 0.0
    %735 = vmatprep.subr.mxu0 0.0
    %736 = vmatpush1.msra.mxu0 0.0
    %737 = vmatprep.subr.mxu0 0.0
    %738 = vmatpush1.msra.mxu0 0.0
    %739 = vmatprep.subr.mxu0 0.0
    %740 = vmatpush1.msra.mxu0 0.0
    %741 = vmatprep.subr.mxu0 0.0
    %742 = vmatpush1.msra.mxu0 0.0
    %743 = vmatprep.subr.mxu0 0.0
    %744 = vmatpush1.msra.mxu0 0.0
    %745 = vmatprep.subr.mxu0 0.0
    %746 = vmatpush1.msra.mxu0 0.0
    %747 = vmatprep.subr.mxu0 0.0
    %748 = vmatpush1.msra.mxu0 0.0
    %749 = vmatprep.subr.mxu0 0.0
    %750 = vmatpush1.msra.mxu0 0.0
    %751 = vmatprep.subr.mxu0 0.0
    %752 = vmatpush1.msra.mxu0 0.0
    %753 = vmatprep.subr.mxu0 0.0
    %754 = vmatpush1.msra.mxu0 0.0
    %755 = vmatprep.subr.mxu0 0.0
    %756 = vmatpush1.msra.mxu0 0.0
    %757 = vmatprep.subr.mxu0 0.0
    %758 = vmatpush1.msra.mxu0 0.0
    %759 = vmatprep.mubr.f32.mxu0 0.0
    %760 = vmatmul.mubr.f32.gmra.mrb[0].mxu0 %v693
    %v761 = vpop.f32.mrb[0].mxu0
    %v762 = vadd.f32 0.0, %v761
    %v763 = vpop.f32.mrb[0].mxu0
    %764 = vdwg.mxu0
    %v766 = vsel %vm424, %v484, 0
    %768 = vmatprep.subr.mxu0 0.0
    %769 = vmatpush1.msra.mxu0 %v545
    %770 = vmatprep.subr.mxu0 0.0
    %771 = vmatpush1.msra.mxu0 0.0
    %772 = vmatprep.subr.mxu0 0.0
    %773 = vmatpush1.msra.mxu0 0.0
    %774 = vmatprep.subr.mxu0 0.0
    %775 = vmatpush1.msra.mxu0 0.0
    %776 = vmatprep.subr.mxu0 0.0
    %777 = vmatpush1.msra.mxu0 0.0
    %778 = vmatprep.subr.mxu0 0.0
    %779 = vmatpush1.msra.mxu0 0.0
    %780 = vmatprep.subr.mxu0 0.0
    %781 = vmatpush1.msra.mxu0 0.0
    %782 = vmatprep.subr.mxu0 0.0
    %783 = vmatpush1.msra.mxu0 0.0
    %784 = vmatprep.subr.mxu0 0.0
    %785 = vmatpush1.msra.mxu0 0.0
    %786 = vmatprep.subr.mxu0 0.0
    %787 = vmatpush1.msra.mxu0 0.0
    %788 = vmatprep.subr.mxu0 0.0
    %789 = vmatpush1.msra.mxu0 0.0
    %790 = vmatprep.subr.mxu0 0.0
    %791 = vmatpush1.msra.mxu0 0.0
    %792 = vmatprep.subr.mxu0 0.0
    %793 = vmatpush1.msra.mxu0 0.0
    %794 = vmatprep.subr.mxu0 0.0
    %795 = vmatpush1.msra.mxu0 0.0
    %796 = vmatprep.subr.mxu0 0.0
    %797 = vmatpush1.msra.mxu0 0.0
    %798 = vmatprep.subr.mxu0 0.0
    %799 = vmatpush1.msra.mxu0 0.0
    %800 = vmatprep.subr.mxu0 0.0
    %801 = vmatpush1.msra.mxu0 0.0
    %802 = vmatprep.subr.mxu0 0.0
    %803 = vmatpush1.msra.mxu0 0.0
    %804 = vmatprep.subr.mxu0 0.0
    %805 = vmatpush1.msra.mxu0 0.0
    %806 = vmatprep.subr.mxu0 0.0
    %807 = vmatpush1.msra.mxu0 0.0
    %808 = vmatprep.subr.mxu0 0.0
    %809 = vmatpush1.msra.mxu0 0.0
    %810 = vmatprep.subr.mxu0 0.0
    %811 = vmatpush1.msra.mxu0 0.0
    %812 = vmatprep.subr.mxu0 0.0
    %813 = vmatpush1.msra.mxu0 0.0
    %814 = vmatprep.subr.mxu0 0.0
    %815 = vmatpush1.msra.mxu0 0.0
    %816 = vmatprep.subr.mxu0 0.0
    %817 = vmatpush1.msra.mxu0 0.0
    %818 = vmatprep.subr.mxu0 0.0
    %819 = vmatpush1.msra.mxu0 0.0
    %820 = vmatprep.subr.mxu0 0.0
    %821 = vmatpush1.msra.mxu0 0.0
    %822 = vmatprep.subr.mxu0 0.0
    %823 = vmatpush1.msra.mxu0 0.0
    %824 = vmatprep.subr.mxu0 0.0
    %825 = vmatpush1.msra.mxu0 0.0
    %826 = vmatprep.subr.mxu0 0.0
    %827 = vmatpush1.msra.mxu0 0.0
    %828 = vmatprep.subr.mxu0 0.0
    %829 = vmatpush1.msra.mxu0 0.0
    %830 = vmatprep.subr.mxu0 0.0
    %831 = vmatpush1.msra.mxu0 0.0
    %832 = vmatprep.mubr.f32.mxu0 0.0
    %833 = vmatmul.mubr.f32.gmra.mrb[0].mxu0 %v766
    %v834 = vpop.f32.mrb[0].mxu0
    %v835 = vadd.f32 0.0, %v834
    %v836 = vpop.f32.mrb[0].mxu0
    %837 = vdwg.mxu0
    %v838 = vadd.f32 %v538, %v616
    %v839 = vadd.f32 %v539, %v689
    %v840 = vadd.f32 %v540, %v762
    %v841 = vadd.f32 %v541, %v835
    %842 = vst.msk [vmem:[#allocation4] sm:$0xff] %vm87, %v838
    %843 = vst.msk [vmem:[#allocation4 + $0x8] sm:$0xff] %vm87, %v839
    %844 = vst.msk [vmem:[#allocation4 + $0x10] sm:$0xff] %vm87, %v840
    %845 = vst.msk [vmem:[#allocation4 + $0x18] sm:$0xff] %vm87, %v841
    %846 = vst.msk [vmem:[#allocation2] sm:$0xff] %vm509, %v437
    %847 = vst.msk [vmem:[#allocation2 + $0x8] sm:$0xff] %vm509, %v438
    %848 = vst.msk [vmem:[#allocation2 + $0x10] sm:$0xff] %vm509, %v439
    %849 = vst.msk [vmem:[#allocation2 + $0x18] sm:$0xff] %vm509, %v440
    // Predicated region
    $region34: #{tpu_custom_call.1} parent=1 // pred_check
      %p850 = pneg %p61
    $region35: #{tpu_custom_call.1} parent=1 // pred_check_branch
      %852 = sbr.rel (%p850) target = $region37
    $region36: #{tpu_custom_call.1} parent=1 // pred_region
      %v853 = vld [vmem:[#allocation3] sm:$0xff]
      %v854 = vld [vmem:[#allocation3 + $0x8] sm:$0xff]
      %v855 = vld [vmem:[#allocation3 + $0x10] sm:$0xff]
      %v856 = vld [vmem:[#allocation3 + $0x18] sm:$0xff]
      %v857 = vrcp.pop %v853
      %v858 = vrcp.pop %v854
      %v859 = vrcp.pop %v855
      %v860 = vrcp.pop %v856
      %v861 = vld [vmem:[#allocation4] sm:$0xff]
      %v862 = vld [vmem:[#allocation4 + $0x8] sm:$0xff]
      %v863 = vld [vmem:[#allocation4 + $0x10] sm:$0xff]
      %v864 = vld [vmem:[#allocation4 + $0x18] sm:$0xff]
      %866 = vset.pattern.permute.xlu0 0
      %867 = vperm.xlu0 %866, %v857
      %v868 = vpop.permute.xlu0 %867
      %871 = vset.pattern.permute.xlu0 0
      %872 = vperm.xlu0 %871, %v858
      %v873 = vpop.permute.xlu0 %872
      %876 = vset.pattern.permute.xlu0 0
      %877 = vperm.xlu0 %876, %v859
      %v878 = vpop.permute.xlu0 %877
      %881 = vset.pattern.permute.xlu0 0
      %882 = vperm.xlu0 %881, %v860
      %v883 = vpop.permute.xlu0 %882
      %v885 = vmul.f32 %v861, %v868
      %v886 = vmul.f32 %v862, %v873
      %v887 = vmul.f32 %v863, %v878
      %v888 = vmul.f32 %v864, %v883
      %889 = vst.msk [vmem:[#allocation11] sm:$0xff] %vm87, %v885
      %890 = vst.msk [vmem:[#allocation11 + $0x8] sm:$0xff] %vm87, %v886
      %891 = vst.msk [vmem:[#allocation11 + $0x10] sm:$0xff] %vm87, %v887
      %892 = vst.msk [vmem:[#allocation11 + $0x18] sm:$0xff] %vm87, %v888
    $region37: #{tpu_custom_call.1} parent=1 // pred_fallthru
      _
    // Predicated region
    $region38: #{tpu_custom_call.1} parent=1 // pred_check
      _
    $region39: #{tpu_custom_call.1} parent=1 // pred_check_branch
      %894 = sbr.rel (0) target = $region41
    $region40: #{tpu_custom_call.1} parent=1 // pred_region
      %s896 = ssub.s32 512, 512
      %897 = vsyncadd [#allocation7], %s896
      %s898 = sshll.u32 [#allocation11], 4
      %s899 = int_to_ptr.vmem [resolvable:$true] %s898
      %904 = dma.vmem_to_hbm [thread:$0]  %s899, 512, %s4, [#allocation7], 128, 128, 8
    $region41: #{tpu_custom_call.1} parent=1 // pred_fallthru
      _
    // Predicated region
    $region42: #{tpu_custom_call.1} parent=1 // pred_check
      _
    $region43: #{tpu_custom_call.1} parent=1 // pred_check_branch
      %906 = sbr.rel (0) target = $region45
    $region44: #{tpu_custom_call.1} parent=1 // pred_region
      %907 = dma.done [#allocation7], 512
    $region45: #{tpu_custom_call.1} parent=1 // pred_fallthru
      _
    %908 = vsyncpa [#allocation6], 1
    %909 = vsyncpa [#allocation9], 1
    %910 = vsyncpa [#allocation7], 1

</llo_original>
